<compile_context>
chip_gen: v6e
topology: v6e:2x2x1
jax: 0.10.0
libtpu: 0.0.40
codegen_flags: <defaults>
</compile_context>

<pallas_src>
import jax
import jax.numpy as jnp
from jax.experimental import pallas as pl
from jax.experimental.pallas import tpu as pltpu

OUT_LANES = 128  # lane-dense slab width (multiple of 128)


def _make_kernel(obs_dim: int, r_bias: int):
    """Build the fused actor+critic kernel for a given packing layout.

    Slab layout (rows x 128 lanes, f32):
      rows [0, obs_dim)              : fused layer-1 weights (lanes 0:2H used)
      rows [obs_dim, obs_dim+128)    : block-diagonal layer-2 weights
      rows [r_bias, r_bias+8)        : row 0 = fused b1, row 1 = packed b2
    """

    def kernel(x_ref, slab_ref, out_ref):
        x = x_ref[...]                                     # [B, D]

        w1 = slab_ref[0:obs_dim, :]                        # [D, 128]   (view)
        w2 = slab_ref[obs_dim:obs_dim + OUT_LANES, :]      # [128, 128] (view)
        bias = slab_ref[r_bias:r_bias + 8, :]              # [8, 128]   (one vreg)
        b1 = bias[0:1, :]                                  # [1, 128]
        b2 = bias[1:2, :]                                  # [1, 128]

        # layer 1: actor hidden in lanes 0:H, critic hidden in lanes H:2H,
        # lanes 2H:128 are exact zeros (zero weights + zero bias -> relu -> 0).
        h = jnp.maximum(
            jnp.dot(x, w1, preferred_element_type=jnp.float32) + b1, 0.0)

        # layer 2: block-diagonal weights -> logits in lanes 0:A, value in
        # lane A, remaining lanes dead (zero weights / zero bias).
        out_ref[...] = (
            jnp.dot(h, w2, preferred_element_type=jnp.float32) + b2)

    return kernel


def pack_params(params):
    """Pack separate actor/critic params into a single weight+bias slab
    (done once, outside the hot path)."""
    D, H = params["w1a"].shape
    A = params["w2a"].shape[1]
    assert 2 * H <= OUT_LANES and A + 1 <= OUT_LANES
    assert D % 8 == 0, "obs_dim must be a multiple of 8 for aligned slices"

    r_w1 = 0
    r_w2 = D
    r_bias = D + OUT_LANES            # multiple of 8 (D is)
    rows = r_bias + 8                 # pad bias block to one full vreg

    slab = jnp.zeros((rows, OUT_LANES), jnp.float32)
    # layer 1: [D, 2H] fused along lanes (actor | critic)
    slab = slab.at[r_w1:r_w1 + D, 0:H].set(params["w1a"])
    slab = slab.at[r_w1:r_w1 + D, H:2 * H].set(params["w1c"])
    # layer 2: block-diagonal on the 128-lane hidden slab
    slab = slab.at[r_w2 + 0:r_w2 + H, 0:A].set(params["w2a"])
    slab = slab.at[r_w2 + H:r_w2 + 2 * H, A:A + 1].set(params["w2c"])
    # biases: row 0 = fused b1, row 1 = packed b2
    slab = slab.at[r_bias, 0:H].set(params["b1a"][0])
    slab = slab.at[r_bias, H:2 * H].set(params["b1c"][0])
    slab = slab.at[r_bias + 1, 0:A].set(params["b2a"][0])
    slab = slab.at[r_bias + 1, A:A + 1].set(params["b2c"][0])

    return {
        "slab": slab,
        "obs_dim": D,
        "hidden": H,
        "num_actions": A,
        "r_bias": r_bias,
    }


def lazy_listener_forward_slab(x, packed, *, batch_tile=256):
    """Runs the fused actor+critic kernel.  Returns the lane-dense [B, 128]
    output slab: logits in cols [0:A], state value in col [A]."""
    B, D = x.shape
    assert D == packed["obs_dim"]
    slab = packed["slab"]
    R = slab.shape[0]
    kernel = _make_kernel(D, packed["r_bias"])
    out_shape = jax.ShapeDtypeStruct((B, OUT_LANES), jnp.float32)

    use_grid = (B % batch_tile == 0) and (B // batch_tile >= 2)
    if use_grid:
        # Batch grid: double-buffered x/out tiles, weight slab resident, batch
        # axis marked "parallel" (sharded across v7x's 2 TensorCores).
        grid_spec = pltpu.PrefetchScalarGridSpec(
            num_scalar_prefetch=0,
            grid=(B // batch_tile,),
            in_specs=[
                pl.BlockSpec((batch_tile, D), lambda i: (i, 0)),
                pl.BlockSpec((R, OUT_LANES), lambda i: (0, 0)),
            ],
            out_specs=pl.BlockSpec((batch_tile, OUT_LANES), lambda i: (i, 0)),
        )
        return pl.pallas_call(
            kernel,
            out_shape=out_shape,
            grid_spec=grid_spec,
            compiler_params=pltpu.CompilerParams(
                dimension_semantics=("parallel",)),
        )(x, slab)

    # Gridless latency path for tiny PPO-test batches: 2 input DMAs + 1 output.
    vmem = pl.BlockSpec(memory_space=pltpu.MemorySpace.VMEM)
    return pl.pallas_call(
        kernel,
        out_shape=out_shape,
        in_specs=[vmem, vmem],
        out_specs=vmem,
    )(x, slab)


class LazyListenerModelPPOTestMJ:
    """Mirrors the PyTorch module's forward / value_function semantics."""

    def __init__(self, packed):
        self.packed = packed
        self.values = None

    def forward(self, input_dict, state, seq_lens=None):
        obs = input_dict["obs"]
        out = lazy_listener_forward_slab(obs, self.packed)
        a = self.packed["num_actions"]
        # NOTE: downstream code that can consume the full [B,128] slab should
        # do so; these two tiny slices are kept only to match the module API.
        logits = out[:, :a]
        self.values = out[:, a:a + 1]
        return logits, state

    def value_function(self):
        return self.values.squeeze(-1)


def make_params(obs_dim, hidden, num_actions, key):
    ks = jax.random.split(key, 4)
    scale_in = 1.0 / jnp.sqrt(obs_dim)
    scale_h = 1.0 / jnp.sqrt(hidden)
    return {
        # actor
        "w1a": jax.random.normal(ks[0], (obs_dim, hidden), jnp.float32) * scale_in,
        "b1a": jnp.zeros((1, hidden), jnp.float32),
        "w2a": jax.random.normal(ks[1], (hidden, num_actions), jnp.float32) * scale_h,
        "b2a": jnp.zeros((1, num_actions), jnp.float32),
        # critic
        "w1c": jax.random.normal(ks[2], (obs_dim, hidden), jnp.float32) * scale_in,
        "b1c": jnp.zeros((1, hidden), jnp.float32),
        "w2c": jax.random.normal(ks[3], (hidden, 1), jnp.float32) * scale_h,
        "b2c": jnp.zeros((1, 1), jnp.float32),
    }


def _reference(obs, params):
    ha = jnp.maximum(obs @ params["w1a"] + params["b1a"], 0.0)
    logits = ha @ params["w2a"] + params["b2a"]
    hc = jnp.maximum(obs @ params["w1c"] + params["b1c"], 0.0)
    values = hc @ params["w2c"] + params["b2c"]
    return logits, values


if __name__ == "__main__":
    B, OBS_DIM, HIDDEN, NUM_ACTIONS = 8, 32, 32, 4

    key = jax.random.PRNGKey(0)
    k_obs, k_par, k_big = jax.random.split(key, 3)
    obs = jax.random.normal(k_obs, (B, OBS_DIM), jnp.float32)
    params = make_params(OBS_DIM, HIDDEN, NUM_ACTIONS, k_par)
    packed = pack_params(params)

    # --- small-batch (gridless) path, via the module-style wrapper ----------
    model = LazyListenerModelPPOTestMJ(packed)
    logits, state = model.forward({"obs": obs}, state=[])
    logits = jax.block_until_ready(logits)
    values = jax.block_until_ready(model.values)
    vf = jax.block_until_ready(model.value_function())

    ref_logits, ref_values = _reference(obs, params)
    assert logits.shape == (B, NUM_ACTIONS)
    assert values.shape == (B, 1)
    assert vf.shape == (B,)
    assert state == []
    assert jnp.allclose(logits, ref_logits, atol=1e-5, rtol=1e-5)
    assert jnp.allclose(values, ref_values, atol=1e-5, rtol=1e-5)
    assert jnp.allclose(vf, ref_values.squeeze(-1), atol=1e-5, rtol=1e-5)

    # --- larger-batch (gridded, "parallel") path ----------------------------
    B_BIG = 512
    obs_big = jax.random.normal(k_big, (B_BIG, OBS_DIM), jnp.float32)
    out_big = jax.block_until_ready(
        lazy_listener_forward_slab(obs_big, packed, batch_tile=256))
    ref_lb, ref_vb = _reference(obs_big, params)
    assert jnp.allclose(out_big[:, :NUM_ACTIONS], ref_lb, atol=1e-5, rtol=1e-5)
    assert jnp.allclose(out_big[:, NUM_ACTIONS:NUM_ACTIONS + 1], ref_vb,
                        atol=1e-5, rtol=1e-5)

    print("KERNEL_OK")
</pallas_src>

<mosaic_0001>
module attributes {stable_mosaic.version = 11 : i64} {
  func.func @kernel(%arg0: memref<8x32xf32, #tpu.memory_space<vmem>>, %arg1: memref<168x128xf32, #tpu.memory_space<vmem>>, %arg2: memref<8x128xf32, #tpu.memory_space<vmem>>) attributes {dimension_semantics = [], scalar_prefetch = 0 : i64, scratch_operands = 0 : i64, tpu.core_type = #tpu.core_type<tc>} {
    %c0 = arith.constant 0 : index
    %c0_0 = arith.constant 0 : index
    %0 = vector.load %arg0[%c0, %c0_0] : memref<8x32xf32, #tpu.memory_space<vmem>>, vector<8x32xf32>
    %c0_1 = arith.constant 0 : index
    %c0_2 = arith.constant 0 : index
    %1 = vector.load %arg1[%c0_1, %c0_2] : memref<168x128xf32, #tpu.memory_space<vmem>>, vector<32x128xf32>
    %c32 = arith.constant 32 : index
    %c0_3 = arith.constant 0 : index
    %2 = vector.load %arg1[%c32, %c0_3] : memref<168x128xf32, #tpu.memory_space<vmem>>, vector<128x128xf32>
    %c160 = arith.constant 160 : index
    %c0_4 = arith.constant 0 : index
    %3 = vector.load %arg1[%c160, %c0_4] : memref<168x128xf32, #tpu.memory_space<vmem>>, vector<8x128xf32>
    %4 = vector.extract_strided_slice %3 {offsets = [0, 0], sizes = [1, 128], strides = [1, 1]} : vector<8x128xf32> to vector<1x128xf32>
    %5 = vector.extract_strided_slice %3 {offsets = [1, 0], sizes = [1, 128], strides = [1, 1]} : vector<8x128xf32> to vector<1x128xf32>
    %cst = arith.constant dense<0.000000e+00> : vector<8x128xf32>
    %6 = tpu.matmul %0, %1, %cst {dimension_numbers = #tpu.dot_dimension_numbers<[1], [0], [0], [1], [0, 0, 1, 1], [], []>} : vector<8x32xf32>, vector<32x128xf32>, vector<8x128xf32> -> vector<8x128xf32>
    %7 = vector.broadcast %4 : vector<1x128xf32> to vector<8x128xf32>
    %8 = arith.addf %6, %7 : vector<8x128xf32>
    %cst_5 = arith.constant 0.000000e+00 : f32
    %9 = vector.broadcast %cst_5 : f32 to vector<8x128xf32>
    %10 = arith.maximumf %8, %9 : vector<8x128xf32>
    %cst_6 = arith.constant dense<0.000000e+00> : vector<8x128xf32>
    %11 = tpu.matmul %10, %2, %cst_6 {dimension_numbers = #tpu.dot_dimension_numbers<[1], [0], [0], [1], [0, 0, 1, 1], [], []>} : vector<8x128xf32>, vector<128x128xf32>, vector<8x128xf32> -> vector<8x128xf32>
    %12 = vector.broadcast %5 : vector<1x128xf32> to vector<8x128xf32>
    %13 = arith.addf %11, %12 : vector<8x128xf32>
    %c0_7 = arith.constant 0 : index
    %c0_8 = arith.constant 0 : index
    %14 = vector.load %arg2[%c0_7, %c0_8] : memref<8x128xf32, #tpu.memory_space<vmem>>, vector<8x128xf32>
    tpu.vector_store %arg2[%c0_7, %c0_8], %13 {strides = array<i32>} : memref<8x128xf32, #tpu.memory_space<vmem>>, vector<8x128xf32>,
    return
  }
}

</mosaic_0001>

<llo_original>
// kernel: tpu_custom_call.1
$region0: #{tpu_custom_call.1}
  #allocation0 [shape = 'u32[]', space=smem, size = 0x4, offset = 0x4, fixed_abs, tag = 'smem constant byte address 0x4 - core index']
  #allocation1 [shape = 'u32[144,128]{1,0:T(1,128)}', space=vmem, size = 0x12000, scoped, tag = 'internal scratch']
  %s0 = inlined_call_operand.hbm [shape: f32[8,32], index: 0, kind: input, shape index: {}]
  %s1 = inlined_call_operand.hbm [shape: f32[168,128], index: 1, kind: input, shape index: {}]
  %s2 = inlined_call_operand.hbm [shape: f32[8,128], index: 2, kind: output, shape index: {}]
  %s3 = sld [smem:[#allocation0]]
  $region26: #{tpu_custom_call.1} parent=0
    _
  %s5 = ssub.s32 1, %s3
  %s6 = scalar_select 0, %s5, %s3
  $region1: #{tpu_custom_call.1} parent=0
    #allocation2 [shape = 'u8[4096]{0}', space=vmem, size = 0x1000, scoped, tag = 'input window, operand 0, single buffered']
    #allocation3 [shape = 's32[1]{0}', space=sflag, size = 0x4, scoped, tag = 'scoped memory for tpu_custom_call.1']
    #allocation4 [shape = 's32[1]{0}', space=sflag, size = 0x4, scoped, tag = 'scoped memory for tpu_custom_call.1']
    #allocation5 [shape = 'u8[86016]{0}', space=vmem, size = 0x15000, scoped, tag = 'input window, operand 1, single buffered']
    #allocation6 [shape = 's32[1]{0}', space=sflag, size = 0x4, scoped, tag = 'scoped memory for tpu_custom_call.1']
    #allocation7 [shape = 'u8[4096]{0}', space=vmem, size = 0x1000, scoped, tag = 'output window, operand 0, single buffered']
    %7 = vsyncpa [#allocation3], 0
    %8 = vsyncpa [#allocation6], 0
    %9 = vsyncpa [#allocation4], 0
    // Predicated region
    $region2: #{tpu_custom_call.1} parent=1 // pred_check
      _
    $region3: #{tpu_custom_call.1} parent=1 // pred_check_branch
      %11 = sbr.rel (0) target = $region5
    $region4: #{tpu_custom_call.1} parent=1 // pred_region
      %s13 = ssub.s32 128, 128
      %14 = vsyncadd [#allocation3], %s13
      %s16 = sshll.u32 [#allocation2], 4
      %s17 = int_to_ptr.vmem [resolvable:$true] %s16
      %19 = dma.hbm_to_vmem [thread:$0]  %s0, 128, %s17, [#allocation3]
    $region5: #{tpu_custom_call.1} parent=1 // pred_fallthru
      _
    // Predicated region
    $region6: #{tpu_custom_call.1} parent=1 // pred_check
      _
    $region7: #{tpu_custom_call.1} parent=1 // pred_check_branch
      %21 = sbr.rel (0) target = $region9
    $region8: #{tpu_custom_call.1} parent=1 // pred_region
      %s23 = ssub.s32 2688, 2688
      %24 = vsyncadd [#allocation6], %s23
      %s25 = sshll.u32 [#allocation5], 4
      %s26 = int_to_ptr.vmem [resolvable:$true] %s25
      %31 = dma.hbm_to_vmem [thread:$0]  %s1, 2688, %s26, [#allocation6], 128, 128, 8
    $region9: #{tpu_custom_call.1} parent=1 // pred_fallthru
      _
    // Predicated region
    $region10: #{tpu_custom_call.1} parent=1 // pred_check
      _
    $region11: #{tpu_custom_call.1} parent=1 // pred_check_branch
      %33 = sbr.rel (0) target = $region13
    $region12: #{tpu_custom_call.1} parent=1 // pred_region
      %34 = dma.done [#allocation3], 128
    $region13: #{tpu_custom_call.1} parent=1 // pred_fallthru
      _
    // Predicated region
    $region14: #{tpu_custom_call.1} parent=1 // pred_check
      _
    $region15: #{tpu_custom_call.1} parent=1 // pred_check_branch
      %36 = sbr.rel (0) target = $region17
    $region16: #{tpu_custom_call.1} parent=1 // pred_region
      %37 = dma.done [#allocation6], 2688
    $region17: #{tpu_custom_call.1} parent=1 // pred_fallthru
      _
    %v38 = vld [vmem:[#allocation2] sm:$0xff]
    %v39 = vld [vmem:[#allocation5] sm:$0xff]
    %v40 = vld [vmem:[#allocation5 + $0x8] sm:$0xff]
    %v41 = vld [vmem:[#allocation5 + $0x10] sm:$0xff]
    %v42 = vld [vmem:[#allocation5 + $0x18] sm:$0xff]
    %v43 = vld [vmem:[#allocation5 + $0x20] sm:$0xff]
    %v44 = vld [vmem:[#allocation5 + $0x28] sm:$0xff]
    %v45 = vld [vmem:[#allocation5 + $0x30] sm:$0xff]
    %v46 = vld [vmem:[#allocation5 + $0x38] sm:$0xff]
    %v47 = vld [vmem:[#allocation5 + $0x40] sm:$0xff]
    %v48 = vld [vmem:[#allocation5 + $0x48] sm:$0xff]
    %v49 = vld [vmem:[#allocation5 + $0x50] sm:$0xff]
    %v50 = vld [vmem:[#allocation5 + $0x58] sm:$0xff]
    %v51 = vld [vmem:[#allocation5 + $0x60] sm:$0xff]
    %v52 = vld [vmem:[#allocation5 + $0x68] sm:$0xff]
    %v53 = vld [vmem:[#allocation5 + $0x70] sm:$0xff]
    %v54 = vld [vmem:[#allocation5 + $0x78] sm:$0xff]
    %v55 = vld [vmem:[#allocation5 + $0x80] sm:$0xff]
    %v56 = vld [vmem:[#allocation5 + $0x88] sm:$0xff]
    %v57 = vld [vmem:[#allocation5 + $0x90] sm:$0xff]
    %v58 = vld [vmem:[#allocation5 + $0x98] sm:$0xff]
    %v59 = vld [vmem:[#allocation5 + $0xa0] sm:$0xff]
    %v60 = vlaneseq
    %v61 = vshrl.u32 %v60, 7
    %v62 = vsub.s32 0, %v61
    %v63 = vrot.slane %v59, %v62
    %vm64 = vcmask 261120
    %v66 = vsel %vm64, %v38, 0
    %68 = vmatprep.subr.mxu0 0.0
    %69 = vmatpush1.msra.mxu0 0.0
    %70 = vmatprep.subr.mxu0 0.0
    %71 = vmatpush1.msra.mxu0 0.0
    %72 = vmatprep.subr.mxu0 0.0
    %73 = vmatpush1.msra.mxu0 0.0
    %74 = vmatprep.subr.mxu0 0.0
    %75 = vmatpush1.msra.mxu0 0.0
    %76 = vmatprep.subr.mxu0 0.0
    %77 = vmatpush1.msra.mxu0 0.0
    %78 = vmatprep.subr.mxu0 0.0
    %79 = vmatpush1.msra.mxu0 0.0
    %80 = vmatprep.subr.mxu0 0.0
    %81 = vmatpush1.msra.mxu0 0.0
    %82 = vmatprep.subr.mxu0 0.0
    %83 = vmatpush1.msra.mxu0 0.0
    %84 = vmatprep.subr.mxu0 0.0
    %85 = vmatpush1.msra.mxu0 0.0
    %86 = vmatprep.subr.mxu0 0.0
    %87 = vmatpush1.msra.mxu0 0.0
    %88 = vmatprep.subr.mxu0 0.0
    %89 = vmatpush1.msra.mxu0 0.0
    %90 = vmatprep.subr.mxu0 0.0
    %91 = vmatpush1.msra.mxu0 0.0
    %92 = vmatprep.subr.mxu0 0.0
    %93 = vmatpush1.msra.mxu0 %v42
    %94 = vmatprep.subr.mxu0 0.0
    %95 = vmatpush1.msra.mxu0 %v41
    %96 = vmatprep.subr.mxu0 0.0
    %97 = vmatpush1.msra.mxu0 %v40
    %98 = vmatprep.subr.mxu0 0.0
    %99 = vmatpush1.msra.mxu0 %v39
    %100 = vmatprep.subr.mxu0 0.0
    %101 = vmatpush2.msra.mxu0 0.0
    %102 = vmatprep.subr.mxu0 0.0
    %103 = vmatpush2.msra.mxu0 0.0
    %104 = vmatprep.subr.mxu0 0.0
    %105 = vmatpush2.msra.mxu0 0.0
    %106 = vmatprep.subr.mxu0 0.0
    %107 = vmatpush2.msra.mxu0 0.0
    %108 = vmatprep.subr.mxu0 0.0
    %109 = vmatpush2.msra.mxu0 0.0
    %110 = vmatprep.subr.mxu0 0.0
    %111 = vmatpush2.msra.mxu0 0.0
    %112 = vmatprep.subr.mxu0 0.0
    %113 = vmatpush2.msra.mxu0 0.0
    %114 = vmatprep.subr.mxu0 0.0
    %115 = vmatpush2.msra.mxu0 0.0
    %116 = vmatprep.subr.mxu0 0.0
    %117 = vmatpush2.msra.mxu0 0.0
    %118 = vmatprep.subr.mxu0 0.0
    %119 = vmatpush2.msra.mxu0 0.0
    %120 = vmatprep.subr.mxu0 0.0
    %121 = vmatpush2.msra.mxu0 0.0
    %122 = vmatprep.subr.mxu0 0.0
    %123 = vmatpush2.msra.mxu0 0.0
    %124 = vmatprep.subr.mxu0 0.0
    %125 = vmatpush2.msra.mxu0 0.0
    %126 = vmatprep.subr.mxu0 0.0
    %127 = vmatpush2.msra.mxu0 0.0
    %128 = vmatprep.subr.mxu0 0.0
    %129 = vmatpush2.msra.mxu0 0.0
    %130 = vmatprep.subr.mxu0 0.0
    %131 = vmatpush2.msra.mxu0 0.0
    %132 = vmatprep.mubr.f32.mxu0 0.0
    %133 = vmatmul.mubr.f32.gmra.mxu0 %v66
    %v134 = vpop.f32.mrf.mxu0
    %v135 = vadd.f32 %v63, %v134
    %v136 = vpop.f32.mrf.mxu0
    %137 = vdwg.mxu0
    %v138 = vmax.f32 %v135, 0.0
    %v139 = vlaneseq
    %v140 = vshrl.u32 %v139, 7
    %v141 = vsub.s32 1, %v140
    %v142 = vrot.slane %v59, %v141
    %143 = vmatprep.subr.mxu0 0.0
    %144 = vmatpush1.msra.mxu0 %v58
    %145 = vmatprep.subr.mxu0 0.0
    %146 = vmatpush1.msra.mxu0 %v57
    %147 = vmatprep.subr.mxu0 0.0
    %148 = vmatpush1.msra.mxu0 %v56
    %149 = vmatprep.subr.mxu0 0.0
    %150 = vmatpush1.msra.mxu0 %v55
    %151 = vmatprep.subr.mxu0 0.0
    %152 = vmatpush1.msra.mxu0 %v54
    %153 = vmatprep.subr.mxu0 0.0
    %154 = vmatpush1.msra.mxu0 %v53
    %155 = vmatprep.subr.mxu0 0.0
    %156 = vmatpush1.msra.mxu0 %v52
    %157 = vmatprep.subr.mxu0 0.0
    %158 = vmatpush1.msra.mxu0 %v51
    %159 = vmatprep.subr.mxu0 0.0
    %160 = vmatpush1.msra.mxu0 %v50
    %161 = vmatprep.subr.mxu0 0.0
    %162 = vmatpush1.msra.mxu0 %v49
    %163 = vmatprep.subr.mxu0 0.0
    %164 = vmatpush1.msra.mxu0 %v48
    %165 = vmatprep.subr.mxu0 0.0
    %166 = vmatpush1.msra.mxu0 %v47
    %167 = vmatprep.subr.mxu0 0.0
    %168 = vmatpush1.msra.mxu0 %v46
    %169 = vmatprep.subr.mxu0 0.0
    %170 = vmatpush1.msra.mxu0 %v45
    %171 = vmatprep.subr.mxu0 0.0
    %172 = vmatpush1.msra.mxu0 %v44
    %173 = vmatprep.subr.mxu0 0.0
    %174 = vmatpush1.msra.mxu0 %v43
    %175 = vmatprep.subr.mxu0 0.0
    %176 = vmatpush2.msra.mxu0 0.0
    %177 = vmatprep.subr.mxu0 0.0
    %178 = vmatpush2.msra.mxu0 0.0
    %179 = vmatprep.subr.mxu0 0.0
    %180 = vmatpush2.msra.mxu0 0.0
    %181 = vmatprep.subr.mxu0 0.0
    %182 = vmatpush2.msra.mxu0 0.0
    %183 = vmatprep.subr.mxu0 0.0
    %184 = vmatpush2.msra.mxu0 0.0
    %185 = vmatprep.subr.mxu0 0.0
    %186 = vmatpush2.msra.mxu0 0.0
    %187 = vmatprep.subr.mxu0 0.0
    %188 = vmatpush2.msra.mxu0 0.0
    %189 = vmatprep.subr.mxu0 0.0
    %190 = vmatpush2.msra.mxu0 0.0
    %191 = vmatprep.subr.mxu0 0.0
    %192 = vmatpush2.msra.mxu0 0.0
    %193 = vmatprep.subr.mxu0 0.0
    %194 = vmatpush2.msra.mxu0 0.0
    %195 = vmatprep.subr.mxu0 0.0
    %196 = vmatpush2.msra.mxu0 0.0
    %197 = vmatprep.subr.mxu0 0.0
    %198 = vmatpush2.msra.mxu0 0.0
    %199 = vmatprep.subr.mxu0 0.0
    %200 = vmatpush2.msra.mxu0 0.0
    %201 = vmatprep.subr.mxu0 0.0
    %202 = vmatpush2.msra.mxu0 0.0
    %203 = vmatprep.subr.mxu0 0.0
    %204 = vmatpush2.msra.mxu0 0.0
    %205 = vmatprep.subr.mxu0 0.0
    %206 = vmatpush2.msra.mxu0 0.0
    %207 = vmatprep.mubr.f32.mxu0 0.0
    %208 = vmatmul.mubr.f32.gmra.mxu0 %v138
    %v209 = vpop.f32.mrf.mxu0
    %v210 = vadd.f32 %v142, %v209
    %v211 = vpop.f32.mrf.mxu0
    %212 = vdwg.mxu0
    %213 = vst [vmem:[#allocation7] sm:$0xff] %v210
    // Predicated region
    $region18: #{tpu_custom_call.1} parent=1 // pred_check
      _
    $region19: #{tpu_custom_call.1} parent=1 // pred_check_branch
      %215 = sbr.rel (0) target = $region21
    $region20: #{tpu_custom_call.1} parent=1 // pred_region
      %s217 = ssub.s32 128, 128
      %218 = vsyncadd [#allocation4], %s217
      %s220 = sshll.u32 [#allocation7], 4
      %s221 = int_to_ptr.vmem [resolvable:$true] %s220
      %223 = dma.vmem_to_hbm [thread:$0]  %s221, 128, %s2, [#allocation4]
    $region21: #{tpu_custom_call.1} parent=1 // pred_fallthru
      _
    // Predicated region
    $region22: #{tpu_custom_call.1} parent=1 // pred_check
      _
    $region23: #{tpu_custom_call.1} parent=1 // pred_check_branch
      %225 = sbr.rel (0) target = $region25
    $region24: #{tpu_custom_call.1} parent=1 // pred_region
      %226 = dma.done [#allocation4], 128
    $region25: #{tpu_custom_call.1} parent=1 // pred_fallthru
      _
    %227 = vsyncpa [#allocation3], 1
    %228 = vsyncpa [#allocation6], 1
    %229 = vsyncpa [#allocation4], 1

</llo_original>
